<compile_context>
chip_gen: v5e
topology: v5e:2x2
jax: 0.10.0
libtpu: 0.0.40
codegen_flags: <defaults>
</compile_context>

<pallas_src>
import functools

import jax
import jax.numpy as jnp
from jax.experimental import pallas as pl
from jax.experimental.pallas import tpu as pltpu


def _cdiv(a, b):
    return -(-a // b)


def _head_kernel(x_ref, w_ref, b_ref, o_ref, acc_ref, *,
                 inv_hw, hw_total, hw_tile, mask_hw):
    # x_ref  : (tile_n, C, hw_tile)  feature block, native dtype (f32 / bf16)
    # w_ref  : (1, C)          f32   fc1 weight (resident across the grid)
    # b_ref  : (1,)            f32   fc1 bias, SMEM scalar
    # o_ref  : (1, 1, tile_n)  f32   per-batch-tile output, batch on lanes
    # acc_ref: (tile_n, C)     f32   spatial-sum accumulator (VMEM scratch)
    j = pl.program_id(1)

    @pl.when(j == 0)
    def _init():
        acc_ref[...] = jnp.zeros_like(acc_ref)

    x = x_ref[...]                                      # native dtype block
    if mask_hw:
        # Ragged last HW tile: zero the out-of-range spatial positions so the
        # pooled sum stays correct.
        hw_idx = jax.lax.broadcasted_iota(jnp.int32, x.shape, 2)
        valid = (j * hw_tile + hw_idx) < hw_total
        x = jnp.where(valid, x, 0)

    # AdaptiveAvgPool2d((1,1)) + Flatten == spatial mean.  Sum here with the
    # upcast fused into the reduction (no full f32 temp); 1/(H*W) is folded
    # into the epilogue.
    acc_ref[...] += jnp.sum(x, axis=-1, dtype=jnp.float32)   # (tile_n, C)

    # Dropout(p): identity in eval mode.
    # TODO(synk): training-mode dropout mask (pltpu.prng_random_bits) not implemented.

    @pl.when(j == pl.num_programs(1) - 1)
    def _finalize():
        # fc1 (out_features=1): weighted lane reduction (VPU/XLU), no MXU.
        r = jnp.sum(acc_ref[...] * w_ref[...], axis=-1)      # (tile_n,)
        o_ref[0, 0, :] = r * inv_hw + b_ref[0]


def _choose_tiles(N, C, HW, itemsize, budget):
    """Pick (tile_n, hw_tile) so one block fits `budget` bytes."""
    row_bytes = C * HW * itemsize
    if row_bytes <= budget:
        hw_tile = HW                                  # full spatial extent
        tile_n = max(1, min(budget // row_bytes, 256))
        if N > 1:
            tile_n = min(tile_n, _cdiv(N, 2))         # >=2 batch tiles (megacore)
        tile_n = min(tile_n, N)
    else:
        # One batch row does not fit: tile HW instead (multiples of 128 lanes).
        tile_n = 1
        hw_tile = (budget // (C * itemsize)) // 128 * 128
        hw_tile = int(max(128, hw_tile))
        if hw_tile >= HW:
            hw_tile = HW
    return int(tile_n), int(hw_tile)


def model_head(x_nchw, w, b, *, tile_n=None, hw_tile=None,
               vmem_block_budget=8 * 1024 * 1024):
    """Head of `Model`: global-avg-pool -> dropout(eval) -> Linear(C, 1).

    x_nchw: (N, C, H, W) backbone feature map (kept in its native dtype/layout)
    w     : (1, C) fc1 weight
    b     : (1,)   fc1 bias
    returns (N, 1) f32
    """
    N, C, H, W = x_nchw.shape
    HW = H * W

    # Free view: no transpose, no pad -> no extra HBM traffic outside the kernel.
    x = x_nchw.reshape(N, C, HW)

    itemsize = jnp.dtype(x.dtype).itemsize
    auto_tn, auto_hw = _choose_tiles(N, C, HW, itemsize, vmem_block_budget)
    if tile_n is None:
        tile_n = auto_tn
    if hw_tile is None:
        hw_tile = auto_hw

    grid_n = _cdiv(N, tile_n)          # ragged last batch tile is legal
    grid_hw = _cdiv(HW, hw_tile)       # ragged last HW tile is masked in-kernel

    w2 = w.reshape(1, C).astype(jnp.float32)
    b1 = b.reshape(1).astype(jnp.float32)

    kernel = functools.partial(
        _head_kernel,
        inv_hw=1.0 / float(HW),
        hw_total=HW,
        hw_tile=hw_tile,
        mask_hw=(HW % hw_tile != 0),
    )

    # Explicit scoped-VMEM sizing: 2 double-buffered input blocks + accumulator
    # + margin (keeps v5e's 16 MiB default from being the limiter, stays well
    # under v7x's 64 MiB physical).
    block_bytes = tile_n * C * hw_tile * itemsize
    acc_bytes = tile_n * max(C, 128) * 4
    vmem_limit = int(min(max(2 * block_bytes + acc_bytes + (4 << 20), 16 << 20),
                         48 << 20))

    out = pl.pallas_call(
        kernel,
        out_shape=jax.ShapeDtypeStruct((grid_n, 1, tile_n), jnp.float32),
        grid_spec=pltpu.PrefetchScalarGridSpec(
            num_scalar_prefetch=0,
            grid=(grid_n, grid_hw),
            in_specs=[
                pl.BlockSpec((tile_n, C, hw_tile), lambda i, j: (i, 0, j)),  # x
                pl.BlockSpec((1, C), lambda i, j: (0, 0)),                   # weight
                pl.BlockSpec(memory_space=pltpu.MemorySpace.SMEM),           # bias
            ],
            out_specs=pl.BlockSpec((1, 1, tile_n), lambda i, j: (i, 0, 0)),
            scratch_shapes=[pltpu.VMEM((tile_n, C), jnp.float32)],
        ),
        compiler_params=pltpu.CompilerParams(
            dimension_semantics=("parallel", "arbitrary"),
            vmem_limit_bytes=vmem_limit,
        ),
        cost_estimate=pl.CostEstimate(
            flops=2 * N * HW * C,
            transcendentals=0,
            bytes_accessed=N * C * HW * itemsize + C * 4 + N * 4,
        ),
    )(x, w2, b1)

    # Drop garbage lanes from the ragged last batch tile, return (N, 1).
    return out.reshape(grid_n * tile_n)[:N].reshape(N, 1)


def _reference(x, w, b):
    xf = x.astype(jnp.float32)
    N, C, H, W = x.shape
    pooled = jnp.mean(xf.reshape(N, C, H * W), axis=-1)          # (N, C)
    return pooled @ w.astype(jnp.float32).T + b.astype(jnp.float32)


if __name__ == "__main__":
    key = jax.random.PRNGKey(0)

    # --- Test 1: small shapes consistent with the module head (f32) ---------
    N, C, H, W = 2, 32, 8, 8
    kx, kw, kb = jax.random.split(key, 3)
    x = jax.random.normal(kx, (N, C, H, W), dtype=jnp.float32)
    bound = 1.0 / jnp.sqrt(jnp.float32(C))
    w = jax.random.uniform(kw, (1, C), minval=-bound, maxval=bound, dtype=jnp.float32)
    b = jax.random.uniform(kb, (1,), minval=-bound, maxval=bound, dtype=jnp.float32)

    out = jax.block_until_ready(model_head(x, w, b))
    ref = _reference(x, w, b)
    assert out.shape == (N, 1)
    assert jnp.allclose(out, ref, atol=1e-5, rtol=1e-5)

    # --- Test 2: ragged batch tile + masked HW tile + bf16 fused upcast -----
    N2, C2, H2, W2 = 3, 24, 12, 12          # HW=144, hw_tile=128 -> ragged tail
    kx2, kw2, kb2 = jax.random.split(jax.random.PRNGKey(1), 3)
    x2 = jax.random.normal(kx2, (N2, C2, H2, W2), dtype=jnp.bfloat16)
    bound2 = 1.0 / jnp.sqrt(jnp.float32(C2))
    w2 = jax.random.uniform(kw2, (1, C2), minval=-bound2, maxval=bound2,
                            dtype=jnp.float32)
    b2 = jax.random.uniform(kb2, (1,), minval=-bound2, maxval=bound2,
                            dtype=jnp.float32)

    out2 = jax.block_until_ready(model_head(x2, w2, b2, tile_n=2, hw_tile=128))
    ref2 = _reference(x2, w2, b2)
    assert out2.shape == (N2, 1)
    assert jnp.allclose(out2, ref2, atol=1e-4, rtol=1e-4)

    print("KERNEL_OK")
</pallas_src>

<mosaic_0001>
module attributes {stable_mosaic.version = 11 : i64} {
  func.func @_head_kernel(%arg0: i32, %arg1: i32, %arg2: memref<1x32x64xf32, #tpu.memory_space<vmem>>, %arg3: memref<1x32xf32, #tpu.memory_space<vmem>>, %arg4: memref<1xf32, #tpu.memory_space<smem>>, %arg5: memref<1x1x1xf32, #tpu.memory_space<vmem>>, %arg6: memref<1x32xf32, #tpu.memory_space<vmem>>) attributes {dimension_semantics = [#tpu.dimension_semantics<parallel>, #tpu.dimension_semantics<arbitrary>], iteration_bounds = array<i64: 2, 1>, scalar_prefetch = 0 : i64, scratch_operands = 1 : i64, tpu.core_type = #tpu.core_type<tc>, window_params = [{transform_indices = @transform_0, window_bounds = array<i64: 1, 32, 64>}, {pipeline_mode = #tpu.pipeline_mode<synchronous>, transform_indices = @transform_1, window_bounds = array<i64: 1, 32>}, {transform_indices = @transform_2, window_bounds = array<i64: 1>}, {transform_indices = @transform_3, window_bounds = array<i64: 1, 1, 1>}]} {
    %c0_i32 = arith.constant 0 : i32
    %0 = arith.cmpi eq, %arg1, %c0_i32 : i32
    %1 = arith.extui %0 : i1 to i32
    %c0_i32_0 = arith.constant 0 : i32
    %2 = arith.cmpi ne, %1, %c0_i32_0 : i32
    scf.if %2 {
      %cst_9 = arith.constant 0.000000e+00 : f32
      %11 = vector.broadcast %cst_9 : f32 to vector<1x32xf32>
      %c0_10 = arith.constant 0 : index
      %c0_11 = arith.constant 0 : index
      %12 = vector.load %arg6[%c0_10, %c0_11] : memref<1x32xf32, #tpu.memory_space<vmem>>, vector<1x32xf32>
      tpu.vector_store %arg6[%c0_10, %c0_11], %11 {strides = array<i32>} : memref<1x32xf32, #tpu.memory_space<vmem>>, vector<1x32xf32>,
    } else {
    }
    %c0 = arith.constant 0 : index
    %c0_1 = arith.constant 0 : index
    %c0_2 = arith.constant 0 : index
    %3 = vector.load %arg2[%c0, %c0_1, %c0_2] : memref<1x32x64xf32, #tpu.memory_space<vmem>>, vector<1x32x64xf32>
    %c0_3 = arith.constant 0 : index
    %c0_4 = arith.constant 0 : index
    %4 = vector.load %arg6[%c0_3, %c0_4] : memref<1x32xf32, #tpu.memory_space<vmem>>, vector<1x32xf32>
    %cst = arith.constant dense<0.000000e+00> : vector<1x32xf32>
    %5 = vector.multi_reduction <add>, %3, %cst [2] : vector<1x32x64xf32> to vector<1x32xf32>
    %6 = arith.addf %4, %5 : vector<1x32xf32>
    %c0_5 = arith.constant 0 : index
    %c0_6 = arith.constant 0 : index
    %7 = vector.load %arg6[%c0_5, %c0_6] : memref<1x32xf32, #tpu.memory_space<vmem>>, vector<1x32xf32>
    tpu.vector_store %arg6[%c0_5, %c0_6], %6 {strides = array<i32>} : memref<1x32xf32, #tpu.memory_space<vmem>>, vector<1x32xf32>,
    %c0_i32_7 = arith.constant 0 : i32
    %8 = arith.cmpi eq, %arg1, %c0_i32_7 : i32
    %9 = arith.extui %8 : i1 to i32
    %c0_i32_8 = arith.constant 0 : i32
    %10 = arith.cmpi ne, %9, %c0_i32_8 : i32
    scf.if %10 {
      %c0_9 = arith.constant 0 : index
      %c0_10 = arith.constant 0 : index
      %11 = vector.load %arg6[%c0_9, %c0_10] : memref<1x32xf32, #tpu.memory_space<vmem>>, vector<1x32xf32>
      %c0_11 = arith.constant 0 : index
      %c0_12 = arith.constant 0 : index
      %12 = vector.load %arg3[%c0_11, %c0_12] : memref<1x32xf32, #tpu.memory_space<vmem>>, vector<1x32xf32>
      %13 = arith.mulf %11, %12 : vector<1x32xf32>
      %cst_13 = arith.constant dense<0.000000e+00> : vector<1xf32>
      %14 = vector.multi_reduction <add>, %13, %cst_13 [1] : vector<1x32xf32> to vector<1xf32>
      %cst_14 = arith.constant 1.562500e-02 : f32
      %15 = vector.broadcast %cst_14 : f32 to vector<1xf32>
      %16 = arith.mulf %14, %15 : vector<1xf32>
      %c0_15 = arith.constant 0 : index
      %17 = memref.load %arg4[%c0_15] : memref<1xf32, #tpu.memory_space<smem>>
      %18 = vector.broadcast %17 : f32 to vector<1xf32>
      %19 = arith.addf %16, %18 : vector<1xf32>
      %c0_16 = arith.constant 0 : index
      %c0_17 = arith.constant 0 : index
      %c0_18 = arith.constant 0 : index
      %20 = vector.load %arg5[%c0_16, %c0_17, %c0_18] : memref<1x1x1xf32, #tpu.memory_space<vmem>>, vector<1x1x1xf32>
      %21 = vector.shape_cast %20 : vector<1x1x1xf32> to vector<1xf32>
      %22 = vector.shape_cast %19 : vector<1xf32> to vector<1x1x1xf32>
      tpu.vector_store %arg5[%c0_16, %c0_17, %c0_18], %22 {strides = array<i32>} : memref<1x1x1xf32, #tpu.memory_space<vmem>>, vector<1x1x1xf32>,
    } else {
    }
    return
  }
  func.func @transform_0(%arg0: i32, %arg1: i32) -> (i32, i32, i32) {
    %c0_i32 = arith.constant 0 : i32
    %c0_i32_0 = arith.constant 0 : i32
    return %arg0, %c0_i32, %arg1 : i32, i32, i32
  }
  func.func @transform_1(%arg0: i32, %arg1: i32) -> (i32, i32) {
    %c0_i32 = arith.constant 0 : i32
    %c0_i32_0 = arith.constant 0 : i32
    %c0_i32_1 = arith.constant 0 : i32
    return %c0_i32, %c0_i32_0 : i32, i32
  }
  func.func @transform_2(%arg0: i32, %arg1: i32) -> i32 {
    %c0_i32 = arith.constant 0 : i32
    %c0_i32_0 = arith.constant 0 : i32
    return %c0_i32 : i32
  }
  func.func @transform_3(%arg0: i32, %arg1: i32) -> (i32, i32, i32) {
    %c0_i32 = arith.constant 0 : i32
    %c0_i32_0 = arith.constant 0 : i32
    %c0_i32_1 = arith.constant 0 : i32
    return %arg0, %c0_i32, %c0_i32_0 : i32, i32, i32
  }
}

</mosaic_0001>

<llo_original>
// kernel: tpu_custom_call.1
$region0: #{tpu_custom_call.1}
  #allocation0 [shape = 'u32[]', space=smem, size = 0x4, offset = 0x4, fixed_abs, tag = 'smem constant byte address 0x4 - core index']
  #allocation1 [shape = 'u32[72,128]{1,0:T(1,128)}', space=vmem, size = 0x9000, scoped, tag = 'internal scratch']
  #allocation2 [shape = 'f32[1,32]{1,0:T(1,128)}', space=vmem, size = 0x200, scoped, tag = 'scratch operand']
  #allocation3 [shape = 'f32[1]{0:T(128)S(6)}', space=smem, size = 0x200, scoped, tag = 'scoped memory for tpu_custom_call.1']
  %s0 = inlined_call_operand.hbm [shape: f32[2,32,64], index: 0, kind: input, shape index: {}]
  %s1 = inlined_call_operand.vmem [shape: f32[1,32], index: 1, kind: input, shape index: {}]
  %s2 = inlined_call_operand.<no memory space> [shape: f32[1], index: 2, kind: input, shape index: {}]
  %s3 = inlined_call_operand.vmem [shape: f32[2,1,1], index: 3, kind: output, shape index: {}]
  %s4 = sld [smem:[#allocation0]]
  $region57: #{tpu_custom_call.1} parent=0
    _
  %s6 = ssub.s32 1, %s4
  %s7 = scalar_select 0, %s6, %s4
  %8 = sst [smem:[#allocation3]] %s2
  $region1: #{tpu_custom_call.1} parent=0
    #allocation4 [shape = 'u8[32768]{0}', space=vmem, size = 0x8000, scoped, tag = 'input window, operand 0']
    #allocation5 [shape = 's32[2]{0}', space=sflag, size = 0x8, scoped, tag = 'scoped memory for tpu_custom_call.1']
    %9 = vsyncpa [#allocation5], 0
    %s10 = scalar_lea.sflag [#allocation5], 1
    %11 = vsyncpa %s10, 0
    loop: start=0, step=1, limit=4
    $region2: #{tpu_custom_call.1} parent=1 // loop_pre_header
      _
    $region3: #{tpu_custom_call.1} parent=1 // loop_header
      %s13 = sphi 0, %s17
      %p14 = scmp.ge.s32.totalorder %s13, 4
      %s20 = sphi 0, %s32
      %s21 = sphi 0, %s28
      %s22 = sphi 0, %s20
      %s23 = sphi 0, %s21
      %s24 = sphi 0, %s22
      %s25 = sphi 0, %s23
      %s37 = sphi 0, %s39
      %s40 = sphi 0, %s37
      %s41 = sphi 0, %s40
      %s57 = sphi 0, %s41
      %s61 = sphi 0, %s61
      %s63 = sphi 0, %s61
      %s64 = sphi 0, %s63
      %s78 = sphi 0, %s64
      %s82 = sphi 0, %s82
      %s84 = sphi 0, %s82
      %s85 = sphi 0, %s84
      %s99 = sphi 0, %s85
      %s105 = sphi 0, %s107
      %s108 = sphi 0, %s105
      %s109 = sphi 0, %s108
      %s125 = sphi 0, %s109
    $region4: #{tpu_custom_call.1} parent=1 // loop_header_branch
      %16 = sbr.rel (%p14) target = $region8
    $region5: #{tpu_custom_call.1} parent=1 // loop_body
      %s18 = ssub.s32 %s13, 1
      %s19 = ssub.s32 %s13, 2
      %s26 = sadd.s32 1, %s21
      %p27 = scmp.ge.s32.totalorder %s26, 1
      %s28 = scalar_select %p27, 0, %s26
      %s29 = sadd.s32 1, %s20
      %s30 = scalar_select %p27, %s29, %s20
      %p31 = scmp.ge.s32.totalorder %s30, 2
      %s32 = scalar_select %p31, 0, %s30
      %s33 = ssub.s32 %s20, %s32
      %s34 = ssub.s32 %s21, %s28
      %s35 = sor.u32 %s33, %s34
      %p36 = scmp.eq.s32.totalorder %s35, 0
      %s38 = sadd.s32 %s37, 1
      %s39 = scalar_select %p36, %s37, %s38
      %p42 = pneg %p36
      %p43 = scmp.eq.s32.totalorder %s13, 1
      %p44 = por %p42, %p43
      %p45 = scmp.ne.s32.totalorder %s37, %s40
      %p46 = scmp.eq.s32.totalorder %s13, 0
      %p47 = por %p45, %p46
      %p48 = scmp.ne.s32.totalorder %s37, %s40
      %p49 = scmp.eq.s32.totalorder %s18, 1
      %p50 = por %p48, %p49
      %p51 = scmp.ne.s32.totalorder %s40, %s41
      %p52 = scmp.eq.s32.totalorder %s18, 0
      %p53 = por %p51, %p52
      %p54 = scmp.ne.s32.totalorder %s40, %s41
      %p55 = scmp.eq.s32.totalorder %s19, 1
      %p56 = por %p54, %p55
      %p58 = scmp.ne.s32.totalorder %s41, %s57
      %p59 = scmp.eq.s32.totalorder %s19, 0
      %p60 = por %p58, %p59
      %s62 = sadd.s32 %s61, 1
      %p65 = scmp.eq.s32.totalorder %s13, 1
      %p66 = scmp.ne.s32.totalorder %s61, %s63
      %p67 = scmp.eq.s32.totalorder %s13, 0
      %p68 = por %p66, %p67
      %p69 = scmp.ne.s32.totalorder %s61, %s63
      %p70 = scmp.eq.s32.totalorder %s18, 1
      %p71 = por %p69, %p70
      %p72 = scmp.ne.s32.totalorder %s63, %s64
      %p73 = scmp.eq.s32.totalorder %s18, 0
      %p74 = por %p72, %p73
      %p75 = scmp.ne.s32.totalorder %s63, %s64
      %p76 = scmp.eq.s32.totalorder %s19, 1
      %p77 = por %p75, %p76
      %p79 = scmp.ne.s32.totalorder %s64, %s78
      %p80 = scmp.eq.s32.totalorder %s19, 0
      %p81 = por %p79, %p80
      %s83 = sadd.s32 %s82, 1
      %p86 = scmp.eq.s32.totalorder %s13, 1
      %p87 = scmp.ne.s32.totalorder %s82, %s84
      %p88 = scmp.eq.s32.totalorder %s13, 0
      %p89 = por %p87, %p88
      %p90 = scmp.ne.s32.totalorder %s82, %s84
      %p91 = scmp.eq.s32.totalorder %s18, 1
      %p92 = por %p90, %p91
      %p93 = scmp.ne.s32.totalorder %s84, %s85
      %p94 = scmp.eq.s32.totalorder %s18, 0
      %p95 = por %p93, %p94
      %p96 = scmp.ne.s32.totalorder %s84, %s85
      %p97 = scmp.eq.s32.totalorder %s19, 1
      %p98 = por %p96, %p97
      %p100 = scmp.ne.s32.totalorder %s85, %s99
      %p101 = scmp.eq.s32.totalorder %s19, 0
      %p102 = por %p100, %p101
      %s103 = ssub.s32 %s20, %s32
      %p104 = scmp.eq.s32.totalorder %s103, 0
      %s106 = sadd.s32 %s105, 1
      %s107 = scalar_select %p104, %s105, %s106
      %p110 = pneg %p104
      %p111 = scmp.eq.s32.totalorder %s13, 1
      %p112 = por %p110, %p111
      %p113 = scmp.ne.s32.totalorder %s105, %s108
      %p114 = scmp.eq.s32.totalorder %s13, 0
      %p115 = por %p113, %p114
      %p116 = scmp.ne.s32.totalorder %s105, %s108
      %p117 = scmp.eq.s32.totalorder %s18, 1
      %p118 = por %p116, %p117
      %p119 = scmp.ne.s32.totalorder %s108, %s109
      %p120 = scmp.eq.s32.totalorder %s18, 0
      %p121 = por %p119, %p120
      %p122 = scmp.ne.s32.totalorder %s108, %s109
      %p123 = scmp.eq.s32.totalorder %s19, 1
      %p124 = por %p122, %p123
      %p126 = scmp.ne.s32.totalorder %s109, %s125
      %p127 = scmp.eq.s32.totalorder %s19, 0
      %p128 = por %p126, %p127
      %p129 = scmp.le.s32.totalorder 1, %s13
      %p130 = scmp.lt.s32.totalorder %s13, 3
      %p131 = pnand %p129, %p130
      %p132 = pneg %p131
      // Predicated region
      $region9: #{tpu_custom_call.1} parent=5 // pred_check
        _
      $region10: #{tpu_custom_call.1} parent=5 // pred_check_branch
        %134 = sbr.rel (%p131) target = $region12
      $region11: #{tpu_custom_call.1} parent=5 // pred_region
        %s135 = ssub.s32 %s13, 1
        // Predicated region
        $region13: #{tpu_custom_call.1} parent=11 // pred_check
          %p136 = pneg %p74
        $region14: #{tpu_custom_call.1} parent=11 // pred_check_branch
          %138 = sbr.rel (%p136) target = $region16
        $region15: #{tpu_custom_call.1} parent=11 // pred_region
          _
        $region16: #{tpu_custom_call.1} parent=11 // pred_fallthru
          _
        // Predicated region
        $region17: #{tpu_custom_call.1} parent=11 // pred_check
          %p139 = pneg %p95
        $region18: #{tpu_custom_call.1} parent=11 // pred_check_branch
          %141 = sbr.rel (%p139) target = $region20
        $region19: #{tpu_custom_call.1} parent=11 // pred_region
          _
        $region20: #{tpu_custom_call.1} parent=11 // pred_fallthru
          _
      $region12: #{tpu_custom_call.1} parent=5 // pred_fallthru
        _
      %p142 = scmp.lt.s32.totalorder %s13, 2
      // Predicated region
      $region21: #{tpu_custom_call.1} parent=5 // pred_check
        %p143 = pneg %p142
      $region22: #{tpu_custom_call.1} parent=5 // pred_check_branch
        %145 = sbr.rel (%p143) target = $region24
      $region23: #{tpu_custom_call.1} parent=5 // pred_region
        // Predicated region
        $region25: #{tpu_custom_call.1} parent=23 // pred_check
          %p146 = pneg %p47
        $region26: #{tpu_custom_call.1} parent=23 // pred_check_branch
          %148 = sbr.rel (%p146) target = $region28
        $region27: #{tpu_custom_call.1} parent=23 // pred_region
          %s149 = sand.u32 %s37, 1
          %s150 = scalar_lea.sflag [#allocation5], %s149
          %s151 = sand.u32 %s37, 1
          %s152 = smul.addr %s151, 32
          %s153 = scalar_lea.vmem [#allocation4], %s152
          %155 = vsyncadd %s150, 0
          %s156 = smul.addr %s20, 4
          %s157 = sadd.s32 %s21, %s156
          %s158 = smul.addr %s157, 8
          %s159 = scalar_lea.hbm %s0, %s158
          %s160 = sshll.u32 %s159, 4
          %s161 = int_to_ptr.hbm [resolvable:$true] %s160
          %s162 = sshll.u32 %s153, 4
          %s163 = int_to_ptr.vmem [resolvable:$true] %s162
          %168 = dma.hbm_to_vmem [thread:$0]  %s161, 512, %s163, %s150, 128, 128, 8
        $region28: #{tpu_custom_call.1} parent=23 // pred_fallthru
          _
      $region24: #{tpu_custom_call.1} parent=5 // pred_fallthru
        _
      %p169 = scmp.le.s32.totalorder 1, %s13
      %p170 = scmp.lt.s32.totalorder %s13, 3
      %p171 = pnand %p169, %p170
      %p172 = pneg %p171
      // Predicated region
      $region29: #{tpu_custom_call.1} parent=5 // pred_check
        _
      $region30: #{tpu_custom_call.1} parent=5 // pred_check_branch
        %174 = sbr.rel (%p171) target = $region32
      $region31: #{tpu_custom_call.1} parent=5 // pred_region
        %s175 = ssub.s32 %s13, 1
        %s176 = sand.u32 %s40, 1
        %s177 = scalar_lea.sflag [#allocation5], %s176
        %s178 = sand.u32 %s40, 1
        %s179 = smul.addr %s178, 32
        %s180 = scalar_lea.vmem [#allocation4], %s179
        // Predicated region
        $region33: #{tpu_custom_call.1} parent=31 // pred_check
          %p181 = pneg %p53
        $region34: #{tpu_custom_call.1} parent=31 // pred_check_branch
          %183 = sbr.rel (%p181) target = $region36
        $region35: #{tpu_custom_call.1} parent=31 // pred_region
          %185 = dma.done %s177, 512
        $region36: #{tpu_custom_call.1} parent=31 // pred_fallthru
          _
        %s186 = sand.u32 %s40, 1
        %s187 = scalar_lea.sflag [#allocation5], %s186
        %s188 = sand.u32 %s40, 1
        %s189 = smul.addr %s188, 32
        %s190 = scalar_lea.vmem [#allocation4], %s189
        %p191 = pneg %p53
        %p192 = pneg %p50
        %p193 = pneg %p74
        %p194 = pneg %p71
        %p195 = pneg %p95
        %p196 = pneg %p92
        %p197 = pneg %p121
        %p198 = pneg %p118
        %p199 = scmp.lt.s32.totalorder %s22, 1
        %s200 = scalar_select %p199, %s22, 1
        %s201 = scalar_lea.vmem %s3, %s200
        %p202 = scmp.lt.s32.totalorder %s22, 1
        %s203 = scalar_select %p202, %s22, 1
        %s204 = scalar_lea.vmem %s3, %s203
        %p205 = scmp.eq.s32.totalorder %s23, 0
        // Predicated region
        $region37: #{tpu_custom_call.1} parent=31 // pred_check
          %p206 = pneg %p205
        $region38: #{tpu_custom_call.1} parent=31 // pred_check_branch
          %208 = sbr.rel (%p206) target = $region40
        $region39: #{tpu_custom_call.1} parent=31 // pred_region
          %vm209 = vcmask 253952
          %210 = vst.msk [vmem:[#allocation2] sm:$0x1] %vm209, 0.0
        $region40: #{tpu_custom_call.1} parent=31 // pred_fallthru
          _
        %v211 = vld [vmem:[%s180] sm:$0xff]
        %v212 = vld [vmem:[%s180 + $0x8] sm:$0xff]
        %v213 = vld [vmem:[%s180 + $0x10] sm:$0xff]
        %v214 = vld [vmem:[%s180 + $0x18] sm:$0xff]
        %v215 = vld [vmem:[#allocation2] sm:$0x1]
        %vm216 = vcmask 523264
        %v217 = vsel %vm216, %v211, 0.0
        %218 = vadd.xlane.f32.xlu0 %v217
        %v219 = vpop.xlane.xlu0 %218
        %v220 = vsel %vm216, %v212, 0.0
        %221 = vadd.xlane.f32.xlu0 %v220
        %v222 = vpop.xlane.xlu0 %221
        %v223 = vsel %vm216, %v213, 0.0
        %224 = vadd.xlane.f32.xlu0 %v223
        %v225 = vpop.xlane.xlu0 %224
        %v226 = vsel %vm216, %v214, 0.0
        %227 = vadd.xlane.f32.xlu0 %v226
        %v228 = vpop.xlane.xlu0 %227
        %v233 = vperm.slane %v219, 0
        %v234 = vperm.slane %v219, 1
        %v235 = vperm.slane %v219, 2
        %v236 = vperm.slane %v219, 3
        %v237 = vperm.slane %v219, 4
        %v238 = vperm.slane %v219, 5
        %v239 = vperm.slane %v219, 6
        %v240 = vperm.slane %v219, 7
        %v241 = vperm.slane %v222, 0
        %v242 = vperm.slane %v222, 1
        %v243 = vperm.slane %v222, 2
        %v244 = vperm.slane %v222, 3
        %v245 = vperm.slane %v222, 4
        %v246 = vperm.slane %v222, 5
        %v247 = vperm.slane %v222, 6
        %v248 = vperm.slane %v222, 7
        %v249 = vperm.slane %v225, 0
        %v250 = vperm.slane %v225, 1
        %v251 = vperm.slane %v225, 2
        %v252 = vperm.slane %v225, 3
        %v253 = vperm.slane %v225, 4
        %v254 = vperm.slane %v225, 5
        %v255 = vperm.slane %v225, 6
        %v256 = vperm.slane %v225, 7
        %v257 = vperm.slane %v228, 0
        %v258 = vperm.slane %v228, 1
        %v259 = vperm.slane %v228, 2
        %v260 = vperm.slane %v228, 3
        %v261 = vperm.slane %v228, 4
        %v262 = vperm.slane %v228, 5
        %v263 = vperm.slane %v228, 6
        %v264 = vperm.slane %v228, 7
        %265 = vst [vmem:[#allocation1] ss:$9 sm:$0xff] %v233
        %s266 = scalar_lea.vmem [#allocation1], 1
        %267 = vst [vmem:[%s266] ss:$9 sm:$0xff] %v234
        %s268 = scalar_lea.vmem [#allocation1], 2
        %269 = vst [vmem:[%s268] ss:$9 sm:$0xff] %v235
        %s270 = scalar_lea.vmem [#allocation1], 3
        %271 = vst [vmem:[%s270] ss:$9 sm:$0xff] %v236
        %s272 = scalar_lea.vmem [#allocation1], 4
        %273 = vst [vmem:[%s272] ss:$9 sm:$0xff] %v237
        %s274 = scalar_lea.vmem [#allocation1], 5
        %275 = vst [vmem:[%s274] ss:$9 sm:$0xff] %v238
        %s276 = scalar_lea.vmem [#allocation1], 6
        %277 = vst [vmem:[%s276] ss:$9 sm:$0xff] %v239
        %s278 = scalar_lea.vmem [#allocation1], 7
        %279 = vst [vmem:[%s278] ss:$9 sm:$0xff] %v240
        %v280 = vld [vmem:[#allocation1] sm:$0xff]
        %281 = vst [vmem:[#allocation1] ss:$9 sm:$0xff] %v241
        %282 = vst [vmem:[%s266] ss:$9 sm:$0xff] %v242
        %283 = vst [vmem:[%s268] ss:$9 sm:$0xff] %v243
        %284 = vst [vmem:[%s270] ss:$9 sm:$0xff] %v244
        %285 = vst [vmem:[%s272] ss:$9 sm:$0xff] %v245
        %286 = vst [vmem:[%s274] ss:$9 sm:$0xff] %v246
        %287 = vst [vmem:[%s276] ss:$9 sm:$0xff] %v247
        %288 = vst [vmem:[%s278] ss:$9 sm:$0xff] %v248
        %v289 = vld [vmem:[#allocation1] sm:$0xff]
        %290 = vst [vmem:[#allocation1] ss:$9 sm:$0xff] %v249
        %291 = vst [vmem:[%s266] ss:$9 sm:$0xff] %v250
        %292 = vst [vmem:[%s268] ss:$9 sm:$0xff] %v251
        %293 = vst [vmem:[%s270] ss:$9 sm:$0xff] %v252
        %294 = vst [vmem:[%s272] ss:$9 sm:$0xff] %v253
        %295 = vst [vmem:[%s274] ss:$9 sm:$0xff] %v254
        %296 = vst [vmem:[%s276] ss:$9 sm:$0xff] %v255
        %297 = vst [vmem:[%s278] ss:$9 sm:$0xff] %v256
        %v298 = vld [vmem:[#allocation1] sm:$0xff]
        %299 = vst [vmem:[#allocation1] ss:$9 sm:$0xff] %v257
        %300 = vst [vmem:[%s266] ss:$9 sm:$0xff] %v258
        %301 = vst [vmem:[%s268] ss:$9 sm:$0xff] %v259
        %302 = vst [vmem:[%s270] ss:$9 sm:$0xff] %v260
        %303 = vst [vmem:[%s272] ss:$9 sm:$0xff] %v261
        %304 = vst [vmem:[%s274] ss:$9 sm:$0xff] %v262
        %305 = vst [vmem:[%s276] ss:$9 sm:$0xff] %v263
        %306 = vst [vmem:[%s278] ss:$9 sm:$0xff] %v264
        %v307 = vld [vmem:[#allocation1] sm:$0xff]
        %308 = vset.pattern.permute.xlu0 0
        %309 = vperm.xlu0 %308, %v280
        %v310 = vpop.permute.xlu0 %309
        %311 = vset.pattern.permute.xlu0 0
        %312 = vperm.xlu0 %311, %v289
        %v313 = vpop.permute.xlu0 %312
        %314 = vset.pattern.permute.xlu0 0
        %315 = vperm.xlu0 %314, %v298
        %v316 = vpop.permute.xlu0 %315
        %317 = vset.pattern.permute.xlu0 0
        %318 = vperm.xlu0 %317, %v307
        %v319 = vpop.permute.xlu0 %318
        %v320 = vlaneseq
        %v321 = vand.u32 %v320, 127
        %v322 = vperm.slane %v310, %v321
        %v323 = vadd.s32 %v321, 4294967288
        %v324 = vperm.slane %v313, %v323
        %vm325 = vcmask 130112
        %v326 = vsel %vm325, %v324, %v322
        %v327 = vadd.s32 %v321, 4294967280
        %v328 = vperm.slane %v316, %v327
        %vm329 = vcmask 195712
        %v330 = vsel %vm329, %v328, %v326
        %v331 = vadd.s32 %v321, 4294967272
        %v332 = vperm.slane %v319, %v331
        %vm333 = vcmask 261312
        %v334 = vsel %vm333, %v332, %v330
        %v336 = vadd.f32 %v215, %v334
        %vm337 = vcmask 253952
        %338 = vst.msk [vmem:[#allocation2] sm:$0x1] %vm337, %v336
        // Predicated region
        $region41: #{tpu_custom_call.1} parent=31 // pred_check
          %p339 = pneg %p205
        $region42: #{tpu_custom_call.1} parent=31 // pred_check_branch
          %341 = sbr.rel (%p339) target = $region44
        $region43: #{tpu_custom_call.1} parent=31 // pred_region
          %v342 = vld [vmem:[#allocation2] sm:$0x1]
          %v343 = vld [vmem:[%s1] sm:$0x1]
          %v344 = vmul.f32 %v342, %v343
          %v345 = vsel %vm337, %v344, 0.0
          %346 = vadd.xlane.f32.xlu0 %v345
          %v347 = vpop.xlane.xlu0 %346
          %v348 = vmul.f32 %v347, 0.015625
          %s349 = sld [smem:[#allocation3]]
          %v350 = vstv %s349
          %v351 = vadd.f32 %v348, %v350
          %vm352 = vcmask 0
          %353 = vst.msk [vmem:[%s204] sm:$0x1] %vm352, %v351
        $region44: #{tpu_custom_call.1} parent=31 // pred_fallthru
          _
        %p354 = scmp.lt.s32.totalorder %s22, 1
        %s355 = scalar_select %p354, %s22, 1
        %s356 = scalar_lea.vmem %s3, %s355
        // Predicated region
        $region45: #{tpu_custom_call.1} parent=31 // pred_check
          %p357 = pneg %p118
        $region46: #{tpu_custom_call.1} parent=31 // pred_check_branch
          %359 = sbr.rel (%p357) target = $region48
        $region47: #{tpu_custom_call.1} parent=31 // pred_region
          _
        $region48: #{tpu_custom_call.1} parent=31 // pred_fallthru
          _
      $region32: #{tpu_custom_call.1} parent=5 // pred_fallthru
        _
      %p360 = scmp.le.s32.totalorder 2, %s13
      // Predicated region
      $region49: #{tpu_custom_call.1} parent=5 // pred_check
        %p361 = pneg %p360
      $region50: #{tpu_custom_call.1} parent=5 // pred_check_branch
        %363 = sbr.rel (%p361) target = $region52
      $region51: #{tpu_custom_call.1} parent=5 // pred_region
        %s364 = ssub.s32 %s13, 2
        // Predicated region
        $region53: #{tpu_custom_call.1} parent=51 // pred_check
          %p365 = pneg %p124
        $region54: #{tpu_custom_call.1} parent=51 // pred_check_branch
          %367 = sbr.rel (%p365) target = $region56
        $region55: #{tpu_custom_call.1} parent=51 // pred_region
          %p368 = scmp.lt.s32.totalorder %s24, 1
          %s369 = scalar_select %p368, %s24, 1
          %s370 = scalar_lea.vmem %s3, %s369
        $region56: #{tpu_custom_call.1} parent=51 // pred_fallthru
          _
      $region52: #{tpu_custom_call.1} parent=5 // pred_fallthru
        _
    $region6: #{tpu_custom_call.1} parent=1 // loop_footer
      %s17 = sadd.s32 1, %s13
    $region7: #{tpu_custom_call.1} parent=1 // loop_footer_branch
      %12 = sbr.rel target = $region3
    $region8: #{tpu_custom_call.1} parent=1 // loop_exit
      _
    %371 = vsyncpa [#allocation5], 1
    %s372 = scalar_lea.sflag [#allocation5], 1
    %373 = vsyncpa %s372, 1

</llo_original>
